<compile_context>
chip_gen: v5e
topology: v5e:2x2
jax: 0.10.0
libtpu: 0.0.40
codegen_flags: <defaults>
</compile_context>

<pallas_src>
import functools

import jax
import jax.numpy as jnp
from jax import lax
from jax.experimental import pallas as pl
from jax.experimental.pallas import tpu as pltpu


def _round_up(x, m):
    return ((x + m - 1) // m) * m


def _sublane_quantum(dtype):
    # f32 -> 8, bf16 -> 16, int8/fp8 -> 32 (sub-32-bit dtypes pack along sublanes).
    return (32 // (jnp.dtype(dtype).itemsize * 8)) * 8


def _rnn_seq_kernel(x_ref, h0_ref, wf_ref, out_ref, hid_ref, *, ct, t_total, guard):
    """Runs `ct` consecutive RNN timesteps for one batch block.

    Lane layout of the combined / carried vector (width P):
      [0, I)     : x_t
      [I, I+H)   : hidden state
      I+H        : constant 1.0 (drives the fused bias row of wf)
      [I+H+1, P) : zeros
    Fused GEMM output z (width P + Oq):
      [0, P)     : next carried vector minus x  (0 | h_new | 1 | 0)
      [P, P+O)   : logits
      [P+O, P+Oq): -1e30  (finite mask for padded logit lanes)
    """
    tchunk = pl.program_id(1)

    @pl.when(tchunk == 0)
    def _():
        hid_ref[...] = h0_ref[...]

    tb, p = hid_ref.shape
    i = x_ref.shape[-1]
    wf = wf_ref[...]                                  # resident weights, loaded once
    zpad = jnp.zeros((tb, p - i), jnp.float32)        # hoisted out of the step loop
    base = tchunk * ct

    def step(s, carry):
        x_t = x_ref[s].astype(jnp.float32)                           # (tb, i)
        comb = jnp.concatenate([x_t, zpad], axis=-1) + hid_ref[...]  # [x | h | 1 | 0]
        z = jnp.dot(comb.astype(wf.dtype), wf,
                    preferred_element_type=jnp.float32)              # (tb, p + oq)
        logits = z[:, p:]                              # pad lanes are exactly -1e30
        m = jnp.max(logits, axis=-1, keepdims=True)
        shifted = logits - m
        lse = jnp.log(jnp.sum(jnp.exp(shifted), axis=-1, keepdims=True))

        def _write():
            hid_ref[...] = z[:, :p]                    # carries hidden + the 1-lane
            out_ref[s] = (shifted - lse).astype(out_ref.dtype)

        if guard:                                      # only when T was padded up
            pl.when(base + s < t_total)(_write)
        else:
            _write()
        return carry

    lax.fori_loop(0, ct, step, 0, unroll=True)


def rnn_sequence_forward(xs, h0, wh, bh, wo, bo, *, batch_block=1024, time_chunk=16,
                         param_dtype=jnp.float32, out_dtype=None):
    """Run the RNN cell over a whole sequence inside one pallas_call.

    xs : (T, B, I)   per-step inputs (f32 or bf16)
    h0 : (B, H)      initial hidden state
    wh : (H, I+H)    i2h weight (nn.Linear layout),  bh : (H,)
    wo : (O, I+H)    i2o weight,                     bo : (O,)

    Returns (log_probs (T, B, O) in out_dtype, final_hidden (B, H) f32).
    """
    T, B, I = xs.shape
    H = wh.shape[0]
    O = wo.shape[0]
    f32 = jnp.float32
    out_dtype = xs.dtype if out_dtype is None else out_dtype

    P = _round_up(I + H + 1, 128)       # combined width (+1 constant bias lane)
    Oq = _round_up(O, 128)              # lane-dense logit group
    Nout = P + Oq

    # --- batch tiling: big blocks, and >=2 blocks when possible (v7x has 2 TCs) ---
    q = max(_sublane_quantum(xs.dtype), _sublane_quantum(out_dtype), 8)
    Bq = _round_up(B, q)
    TB_want = max(q, min(Bq, _round_up(batch_block, q)))
    NB = pl.cdiv(Bq, TB_want)
    if Bq >= 2 * q:
        NB = max(NB, 2)
    TB = _round_up(pl.cdiv(Bq, NB), q)
    Bp = NB * TB

    # --- time chunking: amortize per-grid-step overhead over `CT` steps ---
    NT = pl.cdiv(T, time_chunk)
    CT = pl.cdiv(T, NT)
    Tp = NT * CT

    # --- fuse i2h, i2o, both biases and the logit-pad mask into one weight ---
    wh32, bh32 = jnp.asarray(wh, f32), jnp.asarray(bh, f32)
    wo32, bo32 = jnp.asarray(wo, f32), jnp.asarray(bo, f32)
    wf = jnp.zeros((P, Nout), f32)
    wf = wf.at[:I + H, I:I + H].set(wh32.T)       # i2h
    wf = wf.at[:I + H, P:P + O].set(wo32.T)       # i2o
    wf = wf.at[I + H, I:I + H].set(bh32)          # bias row (driven by the 1-lane)
    wf = wf.at[I + H, P:P + O].set(bo32)
    wf = wf.at[I + H, I + H].set(1.0)             # keeps the 1-lane alive across steps
    wf = wf.at[I + H, P + O:].set(-1e30)          # finite mask for padded logit lanes
    wf = wf.astype(param_dtype)

    # Only tiny per-sequence tensors get padded in the wrapper; xs keeps its real
    # (T, B, I) feature width and the output keeps logits at lanes [0, O).
    h0_pad = jnp.zeros((Bp, P), f32).at[:B, I:I + H].set(h0.astype(f32))
    h0_pad = h0_pad.at[:, I + H].set(1.0)

    x_in = xs
    if (Tp, Bp) != (T, B):
        x_in = jnp.zeros((Tp, Bp, I), xs.dtype).at[:T, :B].set(xs)

    kernel = functools.partial(_rnn_seq_kernel, ct=CT, t_total=T, guard=(Tp != T))

    # Explicit VMEM budget: double-buffered x/out chunks + resident weights/carry.
    item_x = jnp.dtype(x_in.dtype).itemsize
    item_o = jnp.dtype(out_dtype).itemsize
    est = (2 * CT * TB * I * item_x + 2 * CT * TB * Oq * item_o
           + P * Nout * jnp.dtype(param_dtype).itemsize + 3 * TB * P * 4)
    vmem_limit = int(min(64 << 20, max(32 << 20, 2 * est)))

    out_pad, hfin_pad = pl.pallas_call(
        kernel,
        out_shape=(jax.ShapeDtypeStruct((Tp, Bp, Oq), out_dtype),
                   jax.ShapeDtypeStruct((Bp, P), f32)),
        grid=(NB, NT),
        in_specs=[
            pl.BlockSpec((CT, TB, I), lambda b, t: (t, b, 0)),    # x chunk (pipelined)
            pl.BlockSpec((TB, P), lambda b, t: (b, 0)),           # h0 (resident)
            pl.BlockSpec((P, Nout), lambda b, t: (0, 0)),         # fused weight (resident)
        ],
        out_specs=(
            pl.BlockSpec((CT, TB, Oq), lambda b, t: (t, b, 0)),   # per-step log-probs
            pl.BlockSpec((TB, P), lambda b, t: (b, 0)),           # hidden carry / final h
        ),
        compiler_params=pltpu.CompilerParams(
            dimension_semantics=("parallel", "arbitrary"),
            vmem_limit_bytes=vmem_limit),
    )(x_in, h0_pad, wf)

    return out_pad[:T, :B, :O], hfin_pad[:B, I:I + H]


def rnn_forward(x, h, wh, bh, wo, bo):
    """Single RNN-cell step with the same signature/semantics as RNN.forward."""
    log_probs, new_h = rnn_sequence_forward(x[None], h, wh, bh, wo, bo)
    return log_probs[0], new_h


def _init_linear(key, out_features, in_features):
    # Deterministic init mimicking nn.Linear's uniform(-1/sqrt(in), 1/sqrt(in)).
    kw, kb = jax.random.split(key)
    bound = 1.0 / jnp.sqrt(jnp.float32(in_features))
    w = jax.random.uniform(kw, (out_features, in_features), jnp.float32, -bound, bound)
    b = jax.random.uniform(kb, (out_features,), jnp.float32, -bound, bound)
    return w, b


if __name__ == "__main__":
    input_size, hidden_size, output_size = 16, 32, 18   # e.g. 18 name-language classes
    batch, seq_len = 2, 8

    key = jax.random.PRNGKey(0)
    k_x, k_i2h, k_i2o = jax.random.split(key, 3)

    xs = jax.random.normal(k_x, (seq_len, batch, input_size), jnp.float32)
    h0 = jnp.zeros((batch, hidden_size), jnp.float32)   # initHidden, broadcast over batch

    wh, bh = _init_linear(k_i2h, hidden_size, input_size + hidden_size)
    wo, bo = _init_linear(k_i2o, output_size, input_size + hidden_size)

    # Whole-sequence kernel (single pallas_call, recurrence inside the kernel).
    log_probs, h_final = rnn_sequence_forward(xs, h0, wh, bh, wo, bo)
    jax.block_until_ready((log_probs, h_final))

    # Pure-JAX reference: one cell per step, exactly like the PyTorch module.
    h = h0
    ref_outs = []
    for t in range(seq_len):
        comb = jnp.concatenate([xs[t], h], axis=1)
        h = comb @ wh.T + bh
        logits = comb @ wo.T + bo
        ref_outs.append(jax.nn.log_softmax(logits, axis=1))
    ref_out = jnp.stack(ref_outs)

    assert log_probs.shape == (seq_len, batch, output_size)
    assert jnp.allclose(log_probs, ref_out, atol=2e-4, rtol=2e-4), "log_softmax mismatch"
    assert jnp.allclose(h_final, h, atol=2e-4, rtol=2e-4), "hidden mismatch"

    # Single-step API (the module's forward signature).
    o1, h1 = rnn_forward(xs[0], h0, wh, bh, wo, bo)
    jax.block_until_ready((o1, h1))
    assert jnp.allclose(o1, ref_outs[0], atol=2e-4, rtol=2e-4), "single-step mismatch"

    # bf16 weights / IO path (v6e/v7x recommendation): f32 accumulation, f32 hidden carry.
    lp_bf16, h_bf16 = rnn_sequence_forward(
        xs.astype(jnp.bfloat16), h0, wh, bh, wo, bo,
        param_dtype=jnp.bfloat16, out_dtype=jnp.bfloat16)
    jax.block_until_ready((lp_bf16, h_bf16))
    assert lp_bf16.dtype == jnp.bfloat16
    assert lp_bf16.shape == (seq_len, batch, output_size)
    lp32 = lp_bf16.astype(jnp.float32)
    assert bool(jnp.all(jnp.isfinite(lp32))), "bf16 path produced non-finite log-probs"
    prob_sums = jnp.sum(jnp.exp(lp32), axis=-1)
    assert jnp.allclose(prob_sums, 1.0, atol=0.05), "bf16 log_softmax not normalized"

    print("KERNEL_OK")
</pallas_src>

<mosaic_0001>
module attributes {stable_mosaic.version = 11 : i64} {
  func.func @_rnn_seq_kernel(%arg0: i32, %arg1: i32, %arg2: memref<8x8x16xf32, #tpu.memory_space<vmem>>, %arg3: memref<8x128xf32, #tpu.memory_space<vmem>>, %arg4: memref<128x256xf32, #tpu.memory_space<vmem>>, %arg5: memref<8x8x128xf32, #tpu.memory_space<vmem>>, %arg6: memref<8x128xf32, #tpu.memory_space<vmem>>) attributes {dimension_semantics = [#tpu.dimension_semantics<parallel>, #tpu.dimension_semantics<arbitrary>], iteration_bounds = array<i64: 1, 1>, scalar_prefetch = 0 : i64, scratch_operands = 0 : i64, tpu.core_type = #tpu.core_type<tc>, window_params = [{transform_indices = @transform_0, window_bounds = array<i64: 8, 8, 16>}, {transform_indices = @transform_1, window_bounds = array<i64: 8, 128>}, {pipeline_mode = #tpu.pipeline_mode<synchronous>, transform_indices = @transform_2, window_bounds = array<i64: 128, 256>}, {transform_indices = @transform_3, window_bounds = array<i64: 8, 8, 128>}, {transform_indices = @transform_4, window_bounds = array<i64: 8, 128>}]} {
    %c0_i32 = arith.constant 0 : i32
    %0 = arith.cmpi eq, %arg1, %c0_i32 : i32
    %1 = arith.extui %0 : i1 to i32
    %c0_i32_0 = arith.constant 0 : i32
    %2 = arith.cmpi ne, %1, %c0_i32_0 : i32
    scf.if %2 {
      %c0_91 = arith.constant 0 : index
      %c0_92 = arith.constant 0 : index
      %197 = vector.load %arg3[%c0_91, %c0_92] : memref<8x128xf32, #tpu.memory_space<vmem>>, vector<8x128xf32>
      %c0_93 = arith.constant 0 : index
      %c0_94 = arith.constant 0 : index
      %198 = vector.load %arg6[%c0_93, %c0_94] : memref<8x128xf32, #tpu.memory_space<vmem>>, vector<8x128xf32>
      tpu.vector_store %arg6[%c0_93, %c0_94], %197 {strides = array<i32>} : memref<8x128xf32, #tpu.memory_space<vmem>>, vector<8x128xf32>,
    } else {
    }
    %c0 = arith.constant 0 : index
    %c0_1 = arith.constant 0 : index
    %3 = vector.load %arg4[%c0, %c0_1] : memref<128x256xf32, #tpu.memory_space<vmem>>, vector<128x256xf32>
    %cst = arith.constant 0.000000e+00 : f32
    %4 = vector.broadcast %cst : f32 to vector<8x112xf32>
    %c0_i32_2 = arith.constant 0 : i32
    %5 = arith.index_cast %c0_i32_2 : i32 to index
    %c0_3 = arith.constant 0 : index
    %c0_4 = arith.constant 0 : index
    %6 = vector.load %arg2[%5, %c0_3, %c0_4] : memref<8x8x16xf32, #tpu.memory_space<vmem>>, vector<1x8x16xf32>
    %7 = vector.shape_cast %6 : vector<1x8x16xf32> to vector<8x16xf32>
    %8 = tpu.concatenate %7, %4 in 1 : vector<8x16xf32>, vector<8x112xf32> -> vector<8x128xf32>
    %c0_5 = arith.constant 0 : index
    %c0_6 = arith.constant 0 : index
    %9 = vector.load %arg6[%c0_5, %c0_6] : memref<8x128xf32, #tpu.memory_space<vmem>>, vector<8x128xf32>
    %10 = arith.addf %8, %9 : vector<8x128xf32>
    %cst_7 = arith.constant dense<0.000000e+00> : vector<8x256xf32>
    %11 = tpu.matmul %10, %3, %cst_7 {dimension_numbers = #tpu.dot_dimension_numbers<[1], [0], [0], [1], [0, 0, 1, 1], [], []>} : vector<8x128xf32>, vector<128x256xf32>, vector<8x256xf32> -> vector<8x256xf32>
    %12 = vector.extract_strided_slice %11 {offsets = [0, 128], sizes = [8, 128], strides = [1, 1]} : vector<8x256xf32> to vector<8x128xf32>
    %cst_8 = arith.constant dense<0xFF800000> : vector<8xf32>
    %13 = vector.multi_reduction <maximumf>, %12, %cst_8 [1] : vector<8x128xf32> to vector<8xf32>
    %14 = vector.shape_cast %13 : vector<8xf32> to vector<8x1xf32>
    %15 = vector.broadcast %14 : vector<8x1xf32> to vector<8x128xf32>
    %16 = arith.subf %12, %15 : vector<8x128xf32>
    %17 = math.exp %16 : vector<8x128xf32>
    %cst_9 = arith.constant dense<0.000000e+00> : vector<8xf32>
    %18 = vector.multi_reduction <add>, %17, %cst_9 [1] : vector<8x128xf32> to vector<8xf32>
    %19 = vector.shape_cast %18 : vector<8xf32> to vector<8x1xf32>
    %20 = math.log %19 : vector<8x1xf32>
    %21 = vector.extract_strided_slice %11 {offsets = [0, 0], sizes = [8, 128], strides = [1, 1]} : vector<8x256xf32> to vector<8x128xf32>
    %c0_10 = arith.constant 0 : index
    %c0_11 = arith.constant 0 : index
    %22 = vector.load %arg6[%c0_10, %c0_11] : memref<8x128xf32, #tpu.memory_space<vmem>>, vector<8x128xf32>
    tpu.vector_store %arg6[%c0_10, %c0_11], %21 {strides = array<i32>} : memref<8x128xf32, #tpu.memory_space<vmem>>, vector<8x128xf32>,
    %23 = vector.broadcast %20 : vector<8x1xf32> to vector<8x128xf32>
    %24 = arith.subf %16, %23 : vector<8x128xf32>
    %25 = arith.index_cast %c0_i32_2 : i32 to index
    %c0_12 = arith.constant 0 : index
    %c0_13 = arith.constant 0 : index
    %26 = vector.load %arg5[%25, %c0_12, %c0_13] : memref<8x8x128xf32, #tpu.memory_space<vmem>>, vector<1x8x128xf32>
    %27 = vector.shape_cast %26 : vector<1x8x128xf32> to vector<8x128xf32>
    %28 = vector.shape_cast %24 : vector<8x128xf32> to vector<1x8x128xf32>
    tpu.vector_store %arg5[%25, %c0_12, %c0_13], %28 {strides = array<i32>} : memref<8x8x128xf32, #tpu.memory_space<vmem>>, vector<1x8x128xf32>,
    %c1_i32 = arith.constant 1 : i32
    %29 = arith.index_cast %c1_i32 : i32 to index
    %c0_14 = arith.constant 0 : index
    %c0_15 = arith.constant 0 : index
    %30 = vector.load %arg2[%29, %c0_14, %c0_15] : memref<8x8x16xf32, #tpu.memory_space<vmem>>, vector<1x8x16xf32>
    %31 = vector.shape_cast %30 : vector<1x8x16xf32> to vector<8x16xf32>
    %32 = tpu.concatenate %31, %4 in 1 : vector<8x16xf32>, vector<8x112xf32> -> vector<8x128xf32>
    %c0_16 = arith.constant 0 : index
    %c0_17 = arith.constant 0 : index
    %33 = vector.load %arg6[%c0_16, %c0_17] : memref<8x128xf32, #tpu.memory_space<vmem>>, vector<8x128xf32>
    %34 = arith.addf %32, %33 : vector<8x128xf32>
    %cst_18 = arith.constant dense<0.000000e+00> : vector<8x256xf32>
    %35 = tpu.matmul %34, %3, %cst_18 {dimension_numbers = #tpu.dot_dimension_numbers<[1], [0], [0], [1], [0, 0, 1, 1], [], []>} : vector<8x128xf32>, vector<128x256xf32>, vector<8x256xf32> -> vector<8x256xf32>
    %36 = vector.extract_strided_slice %35 {offsets = [0, 128], sizes = [8, 128], strides = [1, 1]} : vector<8x256xf32> to vector<8x128xf32>
    %cst_19 = arith.constant dense<0xFF800000> : vector<8xf32>
    %37 = vector.multi_reduction <maximumf>, %36, %cst_19 [1] : vector<8x128xf32> to vector<8xf32>
    %38 = vector.shape_cast %37 : vector<8xf32> to vector<8x1xf32>
    %39 = vector.broadcast %38 : vector<8x1xf32> to vector<8x128xf32>
    %40 = arith.subf %36, %39 : vector<8x128xf32>
    %41 = math.exp %40 : vector<8x128xf32>
    %cst_20 = arith.constant dense<0.000000e+00> : vector<8xf32>
    %42 = vector.multi_reduction <add>, %41, %cst_20 [1] : vector<8x128xf32> to vector<8xf32>
    %43 = vector.shape_cast %42 : vector<8xf32> to vector<8x1xf32>
    %44 = math.log %43 : vector<8x1xf32>
    %45 = vector.extract_strided_slice %35 {offsets = [0, 0], sizes = [8, 128], strides = [1, 1]} : vector<8x256xf32> to vector<8x128xf32>
    %c0_21 = arith.constant 0 : index
    %c0_22 = arith.constant 0 : index
    %46 = vector.load %arg6[%c0_21, %c0_22] : memref<8x128xf32, #tpu.memory_space<vmem>>, vector<8x128xf32>
    tpu.vector_store %arg6[%c0_21, %c0_22], %45 {strides = array<i32>} : memref<8x128xf32, #tpu.memory_space<vmem>>, vector<8x128xf32>,
    %47 = vector.broadcast %44 : vector<8x1xf32> to vector<8x128xf32>
    %48 = arith.subf %40, %47 : vector<8x128xf32>
    %49 = arith.index_cast %c1_i32 : i32 to index
    %c0_23 = arith.constant 0 : index
    %c0_24 = arith.constant 0 : index
    %50 = vector.load %arg5[%49, %c0_23, %c0_24] : memref<8x8x128xf32, #tpu.memory_space<vmem>>, vector<1x8x128xf32>
    %51 = vector.shape_cast %50 : vector<1x8x128xf32> to vector<8x128xf32>
    %52 = vector.shape_cast %48 : vector<8x128xf32> to vector<1x8x128xf32>
    tpu.vector_store %arg5[%49, %c0_23, %c0_24], %52 {strides = array<i32>} : memref<8x8x128xf32, #tpu.memory_space<vmem>>, vector<1x8x128xf32>,
    %c2_i32 = arith.constant 2 : i32
    %53 = arith.index_cast %c2_i32 : i32 to index
    %c0_25 = arith.constant 0 : index
    %c0_26 = arith.constant 0 : index
    %54 = vector.load %arg2[%53, %c0_25, %c0_26] : memref<8x8x16xf32, #tpu.memory_space<vmem>>, vector<1x8x16xf32>
    %55 = vector.shape_cast %54 : vector<1x8x16xf32> to vector<8x16xf32>
    %56 = tpu.concatenate %55, %4 in 1 : vector<8x16xf32>, vector<8x112xf32> -> vector<8x128xf32>
    %c0_27 = arith.constant 0 : index
    %c0_28 = arith.constant 0 : index
    %57 = vector.load %arg6[%c0_27, %c0_28] : memref<8x128xf32, #tpu.memory_space<vmem>>, vector<8x128xf32>
    %58 = arith.addf %56, %57 : vector<8x128xf32>
    %cst_29 = arith.constant dense<0.000000e+00> : vector<8x256xf32>
    %59 = tpu.matmul %58, %3, %cst_29 {dimension_numbers = #tpu.dot_dimension_numbers<[1], [0], [0], [1], [0, 0, 1, 1], [], []>} : vector<8x128xf32>, vector<128x256xf32>, vector<8x256xf32> -> vector<8x256xf32>
    %60 = vector.extract_strided_slice %59 {offsets = [0, 128], sizes = [8, 128], strides = [1, 1]} : vector<8x256xf32> to vector<8x128xf32>
    %cst_30 = arith.constant dense<0xFF800000> : vector<8xf32>
    %61 = vector.multi_reduction <maximumf>, %60, %cst_30 [1] : vector<8x128xf32> to vector<8xf32>
    %62 = vector.shape_cast %61 : vector<8xf32> to vector<8x1xf32>
    %63 = vector.broadcast %62 : vector<8x1xf32> to vector<8x128xf32>
    %64 = arith.subf %60, %63 : vector<8x128xf32>
    %65 = math.exp %64 : vector<8x128xf32>
    %cst_31 = arith.constant dense<0.000000e+00> : vector<8xf32>
    %66 = vector.multi_reduction <add>, %65, %cst_31 [1] : vector<8x128xf32> to vector<8xf32>
    %67 = vector.shape_cast %66 : vector<8xf32> to vector<8x1xf32>
    %68 = math.log %67 : vector<8x1xf32>
    %69 = vector.extract_strided_slice %59 {offsets = [0, 0], sizes = [8, 128], strides = [1, 1]} : vector<8x256xf32> to vector<8x128xf32>
    %c0_32 = arith.constant 0 : index
    %c0_33 = arith.constant 0 : index
    %70 = vector.load %arg6[%c0_32, %c0_33] : memref<8x128xf32, #tpu.memory_space<vmem>>, vector<8x128xf32>
    tpu.vector_store %arg6[%c0_32, %c0_33], %69 {strides = array<i32>} : memref<8x128xf32, #tpu.memory_space<vmem>>, vector<8x128xf32>,
    %71 = vector.broadcast %68 : vector<8x1xf32> to vector<8x128xf32>
    %72 = arith.subf %64, %71 : vector<8x128xf32>
    %73 = arith.index_cast %c2_i32 : i32 to index
    %c0_34 = arith.constant 0 : index
    %c0_35 = arith.constant 0 : index
    %74 = vector.load %arg5[%73, %c0_34, %c0_35] : memref<8x8x128xf32, #tpu.memory_space<vmem>>, vector<1x8x128xf32>
    %75 = vector.shape_cast %74 : vector<1x8x128xf32> to vector<8x128xf32>
    %76 = vector.shape_cast %72 : vector<8x128xf32> to vector<1x8x128xf32>
    tpu.vector_store %arg5[%73, %c0_34, %c0_35], %76 {strides = array<i32>} : memref<8x8x128xf32, #tpu.memory_space<vmem>>, vector<1x8x128xf32>,
    %c3_i32 = arith.constant 3 : i32
    %77 = arith.index_cast %c3_i32 : i32 to index
    %c0_36 = arith.constant 0 : index
    %c0_37 = arith.constant 0 : index
    %78 = vector.load %arg2[%77, %c0_36, %c0_37] : memref<8x8x16xf32, #tpu.memory_space<vmem>>, vector<1x8x16xf32>
    %79 = vector.shape_cast %78 : vector<1x8x16xf32> to vector<8x16xf32>
    %80 = tpu.concatenate %79, %4 in 1 : vector<8x16xf32>, vector<8x112xf32> -> vector<8x128xf32>
    %c0_38 = arith.constant 0 : index
    %c0_39 = arith.constant 0 : index
    %81 = vector.load %arg6[%c0_38, %c0_39] : memref<8x128xf32, #tpu.memory_space<vmem>>, vector<8x128xf32>
    %82 = arith.addf %80, %81 : vector<8x128xf32>
    %cst_40 = arith.constant dense<0.000000e+00> : vector<8x256xf32>
    %83 = tpu.matmul %82, %3, %cst_40 {dimension_numbers = #tpu.dot_dimension_numbers<[1], [0], [0], [1], [0, 0, 1, 1], [], []>} : vector<8x128xf32>, vector<128x256xf32>, vector<8x256xf32> -> vector<8x256xf32>
    %84 = vector.extract_strided_slice %83 {offsets = [0, 128], sizes = [8, 128], strides = [1, 1]} : vector<8x256xf32> to vector<8x128xf32>
    %cst_41 = arith.constant dense<0xFF800000> : vector<8xf32>
    %85 = vector.multi_reduction <maximumf>, %84, %cst_41 [1] : vector<8x128xf32> to vector<8xf32>
    %86 = vector.shape_cast %85 : vector<8xf32> to vector<8x1xf32>
    %87 = vector.broadcast %86 : vector<8x1xf32> to vector<8x128xf32>
    %88 = arith.subf %84, %87 : vector<8x128xf32>
    %89 = math.exp %88 : vector<8x128xf32>
    %cst_42 = arith.constant dense<0.000000e+00> : vector<8xf32>
    %90 = vector.multi_reduction <add>, %89, %cst_42 [1] : vector<8x128xf32> to vector<8xf32>
    %91 = vector.shape_cast %90 : vector<8xf32> to vector<8x1xf32>
    %92 = math.log %91 : vector<8x1xf32>
    %93 = vector.extract_strided_slice %83 {offsets = [0, 0], sizes = [8, 128], strides = [1, 1]} : vector<8x256xf32> to vector<8x128xf32>
    %c0_43 = arith.constant 0 : index
    %c0_44 = arith.constant 0 : index
    %94 = vector.load %arg6[%c0_43, %c0_44] : memref<8x128xf32, #tpu.memory_space<vmem>>, vector<8x128xf32>
    tpu.vector_store %arg6[%c0_43, %c0_44], %93 {strides = array<i32>} : memref<8x128xf32, #tpu.memory_space<vmem>>, vector<8x128xf32>,
    %95 = vector.broadcast %92 : vector<8x1xf32> to vector<8x128xf32>
    %96 = arith.subf %88, %95 : vector<8x128xf32>
    %97 = arith.index_cast %c3_i32 : i32 to index
    %c0_45 = arith.constant 0 : index
    %c0_46 = arith.constant 0 : index
    %98 = vector.load %arg5[%97, %c0_45, %c0_46] : memref<8x8x128xf32, #tpu.memory_space<vmem>>, vector<1x8x128xf32>
    %99 = vector.shape_cast %98 : vector<1x8x128xf32> to vector<8x128xf32>
    %100 = vector.shape_cast %96 : vector<8x128xf32> to vector<1x8x128xf32>
    tpu.vector_store %arg5[%97, %c0_45, %c0_46], %100 {strides = array<i32>} : memref<8x8x128xf32, #tpu.memory_space<vmem>>, vector<1x8x128xf32>,
    %c4_i32 = arith.constant 4 : i32
    %101 = arith.index_cast %c4_i32 : i32 to index
    %c0_47 = arith.constant 0 : index
    %c0_48 = arith.constant 0 : index
    %102 = vector.load %arg2[%101, %c0_47, %c0_48] : memref<8x8x16xf32, #tpu.memory_space<vmem>>, vector<1x8x16xf32>
    %103 = vector.shape_cast %102 : vector<1x8x16xf32> to vector<8x16xf32>
    %104 = tpu.concatenate %103, %4 in 1 : vector<8x16xf32>, vector<8x112xf32> -> vector<8x128xf32>
    %c0_49 = arith.constant 0 : index
    %c0_50 = arith.constant 0 : index
    %105 = vector.load %arg6[%c0_49, %c0_50] : memref<8x128xf32, #tpu.memory_space<vmem>>, vector<8x128xf32>
    %106 = arith.addf %104, %105 : vector<8x128xf32>
    %cst_51 = arith.constant dense<0.000000e+00> : vector<8x256xf32>
    %107 = tpu.matmul %106, %3, %cst_51 {dimension_numbers = #tpu.dot_dimension_numbers<[1], [0], [0], [1], [0, 0, 1, 1], [], []>} : vector<8x128xf32>, vector<128x256xf32>, vector<8x256xf32> -> vector<8x256xf32>
    %108 = vector.extract_strided_slice %107 {offsets = [0, 128], sizes = [8, 128], strides = [1, 1]} : vector<8x256xf32> to vector<8x128xf32>
    %cst_52 = arith.constant dense<0xFF800000> : vector<8xf32>
    %109 = vector.multi_reduction <maximumf>, %108, %cst_52 [1] : vector<8x128xf32> to vector<8xf32>
    %110 = vector.shape_cast %109 : vector<8xf32> to vector<8x1xf32>
    %111 = vector.broadcast %110 : vector<8x1xf32> to vector<8x128xf32>
    %112 = arith.subf %108, %111 : vector<8x128xf32>
    %113 = math.exp %112 : vector<8x128xf32>
    %cst_53 = arith.constant dense<0.000000e+00> : vector<8xf32>
    %114 = vector.multi_reduction <add>, %113, %cst_53 [1] : vector<8x128xf32> to vector<8xf32>
    %115 = vector.shape_cast %114 : vector<8xf32> to vector<8x1xf32>
    %116 = math.log %115 : vector<8x1xf32>
    %117 = vector.extract_strided_slice %107 {offsets = [0, 0], sizes = [8, 128], strides = [1, 1]} : vector<8x256xf32> to vector<8x128xf32>
    %c0_54 = arith.constant 0 : index
    %c0_55 = arith.constant 0 : index
    %118 = vector.load %arg6[%c0_54, %c0_55] : memref<8x128xf32, #tpu.memory_space<vmem>>, vector<8x128xf32>
    tpu.vector_store %arg6[%c0_54, %c0_55], %117 {strides = array<i32>} : memref<8x128xf32, #tpu.memory_space<vmem>>, vector<8x128xf32>,
    %119 = vector.broadcast %116 : vector<8x1xf32> to vector<8x128xf32>
    %120 = arith.subf %112, %119 : vector<8x128xf32>
    %121 = arith.index_cast %c4_i32 : i32 to index
    %c0_56 = arith.constant 0 : index
    %c0_57 = arith.constant 0 : index
    %122 = vector.load %arg5[%121, %c0_56, %c0_57] : memref<8x8x128xf32, #tpu.memory_space<vmem>>, vector<1x8x128xf32>
    %123 = vector.shape_cast %122 : vector<1x8x128xf32> to vector<8x128xf32>
    %124 = vector.shape_cast %120 : vector<8x128xf32> to vector<1x8x128xf32>
    tpu.vector_store %arg5[%121, %c0_56, %c0_57], %124 {strides = array<i32>} : memref<8x8x128xf32, #tpu.memory_space<vmem>>, vector<1x8x128xf32>,
    %c5_i32 = arith.constant 5 : i32
    %125 = arith.index_cast %c5_i32 : i32 to index
    %c0_58 = arith.constant 0 : index
    %c0_59 = arith.constant 0 : index
    %126 = vector.load %arg2[%125, %c0_58, %c0_59] : memref<8x8x16xf32, #tpu.memory_space<vmem>>, vector<1x8x16xf32>
    %127 = vector.shape_cast %126 : vector<1x8x16xf32> to vector<8x16xf32>
    %128 = tpu.concatenate %127, %4 in 1 : vector<8x16xf32>, vector<8x112xf32> -> vector<8x128xf32>
    %c0_60 = arith.constant 0 : index
    %c0_61 = arith.constant 0 : index
    %129 = vector.load %arg6[%c0_60, %c0_61] : memref<8x128xf32, #tpu.memory_space<vmem>>, vector<8x128xf32>
    %130 = arith.addf %128, %129 : vector<8x128xf32>
    %cst_62 = arith.constant dense<0.000000e+00> : vector<8x256xf32>
    %131 = tpu.matmul %130, %3, %cst_62 {dimension_numbers = #tpu.dot_dimension_numbers<[1], [0], [0], [1], [0, 0, 1, 1], [], []>} : vector<8x128xf32>, vector<128x256xf32>, vector<8x256xf32> -> vector<8x256xf32>
    %132 = vector.extract_strided_slice %131 {offsets = [0, 128], sizes = [8, 128], strides = [1, 1]} : vector<8x256xf32> to vector<8x128xf32>
    %cst_63 = arith.constant dense<0xFF800000> : vector<8xf32>
    %133 = vector.multi_reduction <maximumf>, %132, %cst_63 [1] : vector<8x128xf32> to vector<8xf32>
    %134 = vector.shape_cast %133 : vector<8xf32> to vector<8x1xf32>
    %135 = vector.broadcast %134 : vector<8x1xf32> to vector<8x128xf32>
    %136 = arith.subf %132, %135 : vector<8x128xf32>
    %137 = math.exp %136 : vector<8x128xf32>
    %cst_64 = arith.constant dense<0.000000e+00> : vector<8xf32>
    %138 = vector.multi_reduction <add>, %137, %cst_64 [1] : vector<8x128xf32> to vector<8xf32>
    %139 = vector.shape_cast %138 : vector<8xf32> to vector<8x1xf32>
    %140 = math.log %139 : vector<8x1xf32>
    %141 = vector.extract_strided_slice %131 {offsets = [0, 0], sizes = [8, 128], strides = [1, 1]} : vector<8x256xf32> to vector<8x128xf32>
    %c0_65 = arith.constant 0 : index
    %c0_66 = arith.constant 0 : index
    %142 = vector.load %arg6[%c0_65, %c0_66] : memref<8x128xf32, #tpu.memory_space<vmem>>, vector<8x128xf32>
    tpu.vector_store %arg6[%c0_65, %c0_66], %141 {strides = array<i32>} : memref<8x128xf32, #tpu.memory_space<vmem>>, vector<8x128xf32>,
    %143 = vector.broadcast %140 : vector<8x1xf32> to vector<8x128xf32>
    %144 = arith.subf %136, %143 : vector<8x128xf32>
    %145 = arith.index_cast %c5_i32 : i32 to index
    %c0_67 = arith.constant 0 : index
    %c0_68 = arith.constant 0 : index
    %146 = vector.load %arg5[%145, %c0_67, %c0_68] : memref<8x8x128xf32, #tpu.memory_space<vmem>>, vector<1x8x128xf32>
    %147 = vector.shape_cast %146 : vector<1x8x128xf32> to vector<8x128xf32>
    %148 = vector.shape_cast %144 : vector<8x128xf32> to vector<1x8x128xf32>
    tpu.vector_store %arg5[%145, %c0_67, %c0_68], %148 {strides = array<i32>} : memref<8x8x128xf32, #tpu.memory_space<vmem>>, vector<1x8x128xf32>,
    %c6_i32 = arith.constant 6 : i32
    %149 = arith.index_cast %c6_i32 : i32 to index
    %c0_69 = arith.constant 0 : index
    %c0_70 = arith.constant 0 : index
    %150 = vector.load %arg2[%149, %c0_69, %c0_70] : memref<8x8x16xf32, #tpu.memory_space<vmem>>, vector<1x8x16xf32>
    %151 = vector.shape_cast %150 : vector<1x8x16xf32> to vector<8x16xf32>
    %152 = tpu.concatenate %151, %4 in 1 : vector<8x16xf32>, vector<8x112xf32> -> vector<8x128xf32>
    %c0_71 = arith.constant 0 : index
    %c0_72 = arith.constant 0 : index
    %153 = vector.load %arg6[%c0_71, %c0_72] : memref<8x128xf32, #tpu.memory_space<vmem>>, vector<8x128xf32>
    %154 = arith.addf %152, %153 : vector<8x128xf32>
    %cst_73 = arith.constant dense<0.000000e+00> : vector<8x256xf32>
    %155 = tpu.matmul %154, %3, %cst_73 {dimension_numbers = #tpu.dot_dimension_numbers<[1], [0], [0], [1], [0, 0, 1, 1], [], []>} : vector<8x128xf32>, vector<128x256xf32>, vector<8x256xf32> -> vector<8x256xf32>
    %156 = vector.extract_strided_slice %155 {offsets = [0, 128], sizes = [8, 128], strides = [1, 1]} : vector<8x256xf32> to vector<8x128xf32>
    %cst_74 = arith.constant dense<0xFF800000> : vector<8xf32>
    %157 = vector.multi_reduction <maximumf>, %156, %cst_74 [1] : vector<8x128xf32> to vector<8xf32>
    %158 = vector.shape_cast %157 : vector<8xf32> to vector<8x1xf32>
    %159 = vector.broadcast %158 : vector<8x1xf32> to vector<8x128xf32>
    %160 = arith.subf %156, %159 : vector<8x128xf32>
    %161 = math.exp %160 : vector<8x128xf32>
    %cst_75 = arith.constant dense<0.000000e+00> : vector<8xf32>
    %162 = vector.multi_reduction <add>, %161, %cst_75 [1] : vector<8x128xf32> to vector<8xf32>
    %163 = vector.shape_cast %162 : vector<8xf32> to vector<8x1xf32>
    %164 = math.log %163 : vector<8x1xf32>
    %165 = vector.extract_strided_slice %155 {offsets = [0, 0], sizes = [8, 128], strides = [1, 1]} : vector<8x256xf32> to vector<8x128xf32>
    %c0_76 = arith.constant 0 : index
    %c0_77 = arith.constant 0 : index
    %166 = vector.load %arg6[%c0_76, %c0_77] : memref<8x128xf32, #tpu.memory_space<vmem>>, vector<8x128xf32>
    tpu.vector_store %arg6[%c0_76, %c0_77], %165 {strides = array<i32>} : memref<8x128xf32, #tpu.memory_space<vmem>>, vector<8x128xf32>,
    %167 = vector.broadcast %164 : vector<8x1xf32> to vector<8x128xf32>
    %168 = arith.subf %160, %167 : vector<8x128xf32>
    %169 = arith.index_cast %c6_i32 : i32 to index
    %c0_78 = arith.constant 0 : index
    %c0_79 = arith.constant 0 : index
    %170 = vector.load %arg5[%169, %c0_78, %c0_79] : memref<8x8x128xf32, #tpu.memory_space<vmem>>, vector<1x8x128xf32>
    %171 = vector.shape_cast %170 : vector<1x8x128xf32> to vector<8x128xf32>
    %172 = vector.shape_cast %168 : vector<8x128xf32> to vector<1x8x128xf32>
    tpu.vector_store %arg5[%169, %c0_78, %c0_79], %172 {strides = array<i32>} : memref<8x8x128xf32, #tpu.memory_space<vmem>>, vector<1x8x128xf32>,
    %c7_i32 = arith.constant 7 : i32
    %173 = arith.index_cast %c7_i32 : i32 to index
    %c0_80 = arith.constant 0 : index
    %c0_81 = arith.constant 0 : index
    %174 = vector.load %arg2[%173, %c0_80, %c0_81] : memref<8x8x16xf32, #tpu.memory_space<vmem>>, vector<1x8x16xf32>
    %175 = vector.shape_cast %174 : vector<1x8x16xf32> to vector<8x16xf32>
    %176 = tpu.concatenate %175, %4 in 1 : vector<8x16xf32>, vector<8x112xf32> -> vector<8x128xf32>
    %c0_82 = arith.constant 0 : index
    %c0_83 = arith.constant 0 : index
    %177 = vector.load %arg6[%c0_82, %c0_83] : memref<8x128xf32, #tpu.memory_space<vmem>>, vector<8x128xf32>
    %178 = arith.addf %176, %177 : vector<8x128xf32>
    %cst_84 = arith.constant dense<0.000000e+00> : vector<8x256xf32>
    %179 = tpu.matmul %178, %3, %cst_84 {dimension_numbers = #tpu.dot_dimension_numbers<[1], [0], [0], [1], [0, 0, 1, 1], [], []>} : vector<8x128xf32>, vector<128x256xf32>, vector<8x256xf32> -> vector<8x256xf32>
    %180 = vector.extract_strided_slice %179 {offsets = [0, 128], sizes = [8, 128], strides = [1, 1]} : vector<8x256xf32> to vector<8x128xf32>
    %cst_85 = arith.constant dense<0xFF800000> : vector<8xf32>
    %181 = vector.multi_reduction <maximumf>, %180, %cst_85 [1] : vector<8x128xf32> to vector<8xf32>
    %182 = vector.shape_cast %181 : vector<8xf32> to vector<8x1xf32>
    %183 = vector.broadcast %182 : vector<8x1xf32> to vector<8x128xf32>
    %184 = arith.subf %180, %183 : vector<8x128xf32>
    %185 = math.exp %184 : vector<8x128xf32>
    %cst_86 = arith.constant dense<0.000000e+00> : vector<8xf32>
    %186 = vector.multi_reduction <add>, %185, %cst_86 [1] : vector<8x128xf32> to vector<8xf32>
    %187 = vector.shape_cast %186 : vector<8xf32> to vector<8x1xf32>
    %188 = math.log %187 : vector<8x1xf32>
    %189 = vector.extract_strided_slice %179 {offsets = [0, 0], sizes = [8, 128], strides = [1, 1]} : vector<8x256xf32> to vector<8x128xf32>
    %c0_87 = arith.constant 0 : index
    %c0_88 = arith.constant 0 : index
    %190 = vector.load %arg6[%c0_87, %c0_88] : memref<8x128xf32, #tpu.memory_space<vmem>>, vector<8x128xf32>
    tpu.vector_store %arg6[%c0_87, %c0_88], %189 {strides = array<i32>} : memref<8x128xf32, #tpu.memory_space<vmem>>, vector<8x128xf32>,
    %191 = vector.broadcast %188 : vector<8x1xf32> to vector<8x128xf32>
    %192 = arith.subf %184, %191 : vector<8x128xf32>
    %193 = arith.index_cast %c7_i32 : i32 to index
    %c0_89 = arith.constant 0 : index
    %c0_90 = arith.constant 0 : index
    %194 = vector.load %arg5[%193, %c0_89, %c0_90] : memref<8x8x128xf32, #tpu.memory_space<vmem>>, vector<1x8x128xf32>
    %195 = vector.shape_cast %194 : vector<1x8x128xf32> to vector<8x128xf32>
    %196 = vector.shape_cast %192 : vector<8x128xf32> to vector<1x8x128xf32>
    tpu.vector_store %arg5[%193, %c0_89, %c0_90], %196 {strides = array<i32>} : memref<8x8x128xf32, #tpu.memory_space<vmem>>, vector<1x8x128xf32>,
    %c8_i32 = arith.constant 8 : i32
    return
  }
  func.func @transform_0(%arg0: i32, %arg1: i32) -> (i32, i32, i32) {
    %c0_i32 = arith.constant 0 : i32
    %c0_i32_0 = arith.constant 0 : i32
    return %arg1, %arg0, %c0_i32 : i32, i32, i32
  }
  func.func @transform_1(%arg0: i32, %arg1: i32) -> (i32, i32) {
    %c0_i32 = arith.constant 0 : i32
    %c0_i32_0 = arith.constant 0 : i32
    return %arg0, %c0_i32 : i32, i32
  }
  func.func @transform_2(%arg0: i32, %arg1: i32) -> (i32, i32) {
    %c0_i32 = arith.constant 0 : i32
    %c0_i32_0 = arith.constant 0 : i32
    %c0_i32_1 = arith.constant 0 : i32
    return %c0_i32, %c0_i32_0 : i32, i32
  }
  func.func @transform_3(%arg0: i32, %arg1: i32) -> (i32, i32, i32) {
    %c0_i32 = arith.constant 0 : i32
    %c0_i32_0 = arith.constant 0 : i32
    return %arg1, %arg0, %c0_i32 : i32, i32, i32
  }
  func.func @transform_4(%arg0: i32, %arg1: i32) -> (i32, i32) {
    %c0_i32 = arith.constant 0 : i32
    %c0_i32_0 = arith.constant 0 : i32
    return %arg0, %c0_i32 : i32, i32
  }
}

</mosaic_0001>

<llo_original>
// kernel: tpu_custom_call.1
$region0: #{tpu_custom_call.1}
  #allocation0 [shape = 'u32[]', space=smem, size = 0x4, offset = 0x4, fixed_abs, tag = 'smem constant byte address 0x4 - core index']
  #allocation1 [shape = 'u32[72,128]{1,0:T(1,128)}', space=vmem, size = 0x9000, scoped, tag = 'internal scratch']
  %s0 = inlined_call_operand.hbm [shape: f32[8,8,16], index: 0, kind: input, shape index: {}]
  %s1 = inlined_call_operand.hbm [shape: f32[8,128], index: 1, kind: input, shape index: {}]
  %s2 = inlined_call_operand.hbm [shape: f32[128,256], index: 2, kind: input, shape index: {}]
  %s3 = inlined_call_operand.hbm [shape: f32[8,8,128], index: 3, kind: output, shape index: {0}]
  %s4 = inlined_call_operand.hbm [shape: f32[8,128], index: 4, kind: output, shape index: {1}]
  %5 = xla_tuple %s3, %s4
  %s6 = sld [smem:[#allocation0]]
  $region46: #{tpu_custom_call.1} parent=0
    _
  %s8 = ssub.s32 1, %s6
  %s9 = scalar_select 0, %s8, %s6
  $region1: #{tpu_custom_call.1} parent=0
    #allocation2 [shape = 'u8[32768]{0}', space=vmem, size = 0x8000, scoped, tag = 'input window, operand 0, single buffered']
    #allocation3 [shape = 's32[1]{0}', space=sflag, size = 0x4, scoped, tag = 'scoped memory for tpu_custom_call.1']
    #allocation4 [shape = 's32[1]{0}', space=sflag, size = 0x4, scoped, tag = 'scoped memory for tpu_custom_call.1']
    #allocation5 [shape = 'u8[4096]{0}', space=vmem, size = 0x1000, scoped, tag = 'input window, operand 1, single buffered']
    #allocation6 [shape = 's32[1]{0}', space=sflag, size = 0x4, scoped, tag = 'scoped memory for tpu_custom_call.1']
    #allocation7 [shape = 'u8[131072]{0}', space=vmem, size = 0x20000, scoped, tag = 'input window, operand 2, single buffered']
    #allocation8 [shape = 'u8[32768]{0}', space=vmem, size = 0x8000, scoped, tag = 'output window, operand 0, single buffered']
    #allocation9 [shape = 'u8[4096]{0}', space=vmem, size = 0x1000, scoped, tag = 'output window, operand 1, single buffered']
    #allocation10 [shape = 's32[1]{0}', space=sflag, size = 0x4, scoped, tag = 'scoped memory for tpu_custom_call.1']
    %10 = vsyncpa [#allocation3], 0
    %11 = vsyncpa [#allocation6], 0
    %12 = vsyncpa [#allocation4], 0
    %13 = vsyncpa [#allocation10], 0
    // Predicated region
    $region2: #{tpu_custom_call.1} parent=1 // pred_check
      _
    $region3: #{tpu_custom_call.1} parent=1 // pred_check_branch
      %15 = sbr.rel (0) target = $region5
    $region4: #{tpu_custom_call.1} parent=1 // pred_region
      %17 = vsyncadd [#allocation3], 0
      %s18 = sshll.u32 %s0, 4
      %s19 = int_to_ptr.hbm [resolvable:$true] %s18
      %s20 = sshll.u32 [#allocation2], 4
      %s21 = int_to_ptr.vmem [resolvable:$true] %s20
      %26 = dma.hbm_to_vmem [thread:$0]  %s19, 1024, %s21, [#allocation3], 128, 128, 8
    $region5: #{tpu_custom_call.1} parent=1 // pred_fallthru
      _
    // Predicated region
    $region6: #{tpu_custom_call.1} parent=1 // pred_check
      _
    $region7: #{tpu_custom_call.1} parent=1 // pred_check_branch
      %28 = sbr.rel (0) target = $region9
    $region8: #{tpu_custom_call.1} parent=1 // pred_region
      %30 = vsyncadd [#allocation6], 0
      %s32 = sshll.u32 %s1, 4
      %s33 = int_to_ptr.hbm [resolvable:$true] %s32
      %s34 = sshll.u32 [#allocation5], 4
      %s35 = int_to_ptr.vmem [resolvable:$true] %s34
      %37 = dma.hbm_to_vmem [thread:$0]  %s33, 128, %s35, [#allocation6]
    $region9: #{tpu_custom_call.1} parent=1 // pred_fallthru
      _
    // Predicated region
    $region10: #{tpu_custom_call.1} parent=1 // pred_check
      _
    $region11: #{tpu_custom_call.1} parent=1 // pred_check_branch
      %39 = sbr.rel (0) target = $region13
    $region12: #{tpu_custom_call.1} parent=1 // pred_region
      %41 = vsyncadd [#allocation6], 0
      %s42 = sshll.u32 %s2, 4
      %s43 = int_to_ptr.hbm [resolvable:$true] %s42
      %s44 = sshll.u32 [#allocation7], 4
      %s45 = int_to_ptr.vmem [resolvable:$true] %s44
      %50 = dma.hbm_to_vmem [thread:$0]  %s43, 4096, %s45, [#allocation6], 256, 256, 16
    $region13: #{tpu_custom_call.1} parent=1 // pred_fallthru
      _
    // Predicated region
    $region14: #{tpu_custom_call.1} parent=1 // pred_check
      _
    $region15: #{tpu_custom_call.1} parent=1 // pred_check_branch
      %52 = sbr.rel (0) target = $region17
    $region16: #{tpu_custom_call.1} parent=1 // pred_region
      %54 = dma.done [#allocation3], 1024
    $region17: #{tpu_custom_call.1} parent=1 // pred_fallthru
      _
    // Predicated region
    $region18: #{tpu_custom_call.1} parent=1 // pred_check
      _
    $region19: #{tpu_custom_call.1} parent=1 // pred_check_branch
      %56 = sbr.rel (0) target = $region21
    $region20: #{tpu_custom_call.1} parent=1 // pred_region
      %58 = dma.done [#allocation6], 128
    $region21: #{tpu_custom_call.1} parent=1 // pred_fallthru
      _
    // Predicated region
    $region22: #{tpu_custom_call.1} parent=1 // pred_check
      _
    $region23: #{tpu_custom_call.1} parent=1 // pred_check_branch
      %60 = sbr.rel (0) target = $region25
    $region24: #{tpu_custom_call.1} parent=1 // pred_region
      %62 = dma.done [#allocation6], 4096
    $region25: #{tpu_custom_call.1} parent=1 // pred_fallthru
      _
    %p63 = scmp.eq.s32.totalorder 0, 0
    // Predicated region
    $region26: #{tpu_custom_call.1} parent=1 // pred_check
      %p64 = pneg %p63
    $region27: #{tpu_custom_call.1} parent=1 // pred_check_branch
      %66 = sbr.rel (%p64) target = $region29
    $region28: #{tpu_custom_call.1} parent=1 // pred_region
      %v67 = vld [vmem:[#allocation5] sm:$0xff]
      %68 = vst [vmem:[#allocation9] sm:$0xff] %v67
    $region29: #{tpu_custom_call.1} parent=1 // pred_fallthru
      _
    %v69 = vld [vmem:[#allocation7] sm:$0xff]
    %v70 = vld [vmem:[#allocation7 + $0x8] sm:$0xff]
    %v71 = vld [vmem:[#allocation7 + $0x10] sm:$0xff]
    %v72 = vld [vmem:[#allocation7 + $0x18] sm:$0xff]
    %v73 = vld [vmem:[#allocation7 + $0x20] sm:$0xff]
    %v74 = vld [vmem:[#allocation7 + $0x28] sm:$0xff]
    %v75 = vld [vmem:[#allocation7 + $0x30] sm:$0xff]
    %v76 = vld [vmem:[#allocation7 + $0x38] sm:$0xff]
    %v77 = vld [vmem:[#allocation7 + $0x40] sm:$0xff]
    %v78 = vld [vmem:[#allocation7 + $0x48] sm:$0xff]
    %v79 = vld [vmem:[#allocation7 + $0x50] sm:$0xff]
    %v80 = vld [vmem:[#allocation7 + $0x58] sm:$0xff]
    %v81 = vld [vmem:[#allocation7 + $0x60] sm:$0xff]
    %v82 = vld [vmem:[#allocation7 + $0x68] sm:$0xff]
    %v83 = vld [vmem:[#allocation7 + $0x70] sm:$0xff]
    %v84 = vld [vmem:[#allocation7 + $0x78] sm:$0xff]
    %v85 = vld [vmem:[#allocation7 + $0x80] sm:$0xff]
    %v86 = vld [vmem:[#allocation7 + $0x88] sm:$0xff]
    %v87 = vld [vmem:[#allocation7 + $0x90] sm:$0xff]
    %v88 = vld [vmem:[#allocation7 + $0x98] sm:$0xff]
    %v89 = vld [vmem:[#allocation7 + $0xa0] sm:$0xff]
    %v90 = vld [vmem:[#allocation7 + $0xa8] sm:$0xff]
    %v91 = vld [vmem:[#allocation7 + $0xb0] sm:$0xff]
    %v92 = vld [vmem:[#allocation7 + $0xb8] sm:$0xff]
    %v93 = vld [vmem:[#allocation7 + $0xc0] sm:$0xff]
    %v94 = vld [vmem:[#allocation7 + $0xc8] sm:$0xff]
    %v95 = vld [vmem:[#allocation7 + $0xd0] sm:$0xff]
    %v96 = vld [vmem:[#allocation7 + $0xd8] sm:$0xff]
    %v97 = vld [vmem:[#allocation7 + $0xe0] sm:$0xff]
    %v98 = vld [vmem:[#allocation7 + $0xe8] sm:$0xff]
    %v99 = vld [vmem:[#allocation7 + $0xf0] sm:$0xff]
    %v100 = vld [vmem:[#allocation7 + $0xf8] sm:$0xff]
    %v101 = vld [vmem:[#allocation2] sm:$0xff]
    %vm102 = vcmask 130048
    %v103 = vsel %vm102, %v101, 0.0
    %v104 = vld [vmem:[#allocation9] sm:$0xff]
    %v105 = vadd.f32 %v103, %v104
    %106 = vmatpush.msra.mxu0 %v99
    %107 = vmatpush.msra.mxu0 %v97
    %108 = vmatpush.msra.mxu0 %v95
    %109 = vmatpush.msra.mxu0 %v93
    %110 = vmatpush.msra.mxu0 %v91
    %111 = vmatpush.msra.mxu0 %v89
    %112 = vmatpush.msra.mxu0 %v87
    %113 = vmatpush.msra.mxu0 %v85
    %114 = vmatpush.msra.mxu0 %v83
    %115 = vmatpush.msra.mxu0 %v81
    %116 = vmatpush.msra.mxu0 %v79
    %117 = vmatpush.msra.mxu0 %v77
    %118 = vmatpush.msra.mxu0 %v75
    %119 = vmatpush.msra.mxu0 %v73
    %120 = vmatpush.msra.mxu0 %v71
    %121 = vmatpush.msra.mxu0 %v69
    %122 = vmatmul.f32.gmra.mxu0 %v105
    %v123 = vpop.f32.mrf.mxu0
    %v124 = vadd.f32 0.0, %v123
    %125 = vdwg.mxu0
    %126 = vmatpush.msra.mxu0 %v100
    %127 = vmatpush.msra.mxu0 %v98
    %128 = vmatpush.msra.mxu0 %v96
    %129 = vmatpush.msra.mxu0 %v94
    %130 = vmatpush.msra.mxu0 %v92
    %131 = vmatpush.msra.mxu0 %v90
    %132 = vmatpush.msra.mxu0 %v88
    %133 = vmatpush.msra.mxu0 %v86
    %134 = vmatpush.msra.mxu0 %v84
    %135 = vmatpush.msra.mxu0 %v82
    %136 = vmatpush.msra.mxu0 %v80
    %137 = vmatpush.msra.mxu0 %v78
    %138 = vmatpush.msra.mxu0 %v76
    %139 = vmatpush.msra.mxu0 %v74
    %140 = vmatpush.msra.mxu0 %v72
    %141 = vmatpush.msra.mxu0 %v70
    %142 = vmatmul.f32.gmra.mxu0 %v105
    %v143 = vpop.f32.mrf.mxu0
    %v144 = vadd.f32 0.0, %v143
    %145 = vdwg.mxu0
    %146 = vmax.xlane.f32.xlu0 %v144
    %v147 = vpop.xlane.xlu0 %146
    %v148 = vsub.f32 %v144, %v147
    %v149 = vmul.f32 %v148, 1.442695
    %v150 = vpow.pop %v149
    %151 = vadd.xlane.f32.xlu0 %v150
    %v152 = vpop.xlane.xlu0 %151
    %v153 = vlog2.pop %v152
    %v154 = vmul.f32 %v153, 0.6931472
    %155 = vst [vmem:[#allocation9] sm:$0xff] %v124
    %v156 = vsub.f32 %v148, %v154
    %157 = vst [vmem:[#allocation8] sm:$0xff] %v156
    %s158 = scalar_lea.vmem [#allocation2], 8
    %v159 = vld [vmem:[%s158] sm:$0xff]
    %v160 = vsel %vm102, %v159, 0.0
    %v161 = vld [vmem:[#allocation9] sm:$0xff]
    %v162 = vadd.f32 %v160, %v161
    %163 = vmatpush.msra.mxu0 %v99
    %164 = vmatpush.msra.mxu0 %v97
    %165 = vmatpush.msra.mxu0 %v95
    %166 = vmatpush.msra.mxu0 %v93
    %167 = vmatpush.msra.mxu0 %v91
    %168 = vmatpush.msra.mxu0 %v89
    %169 = vmatpush.msra.mxu0 %v87
    %170 = vmatpush.msra.mxu0 %v85
    %171 = vmatpush.msra.mxu0 %v83
    %172 = vmatpush.msra.mxu0 %v81
    %173 = vmatpush.msra.mxu0 %v79
    %174 = vmatpush.msra.mxu0 %v77
    %175 = vmatpush.msra.mxu0 %v75
    %176 = vmatpush.msra.mxu0 %v73
    %177 = vmatpush.msra.mxu0 %v71
    %178 = vmatpush.msra.mxu0 %v69
    %179 = vmatmul.f32.gmra.mxu0 %v162
    %v180 = vpop.f32.mrf.mxu0
    %v181 = vadd.f32 0.0, %v180
    %182 = vdwg.mxu0
    %183 = vmatpush.msra.mxu0 %v100
    %184 = vmatpush.msra.mxu0 %v98
    %185 = vmatpush.msra.mxu0 %v96
    %186 = vmatpush.msra.mxu0 %v94
    %187 = vmatpush.msra.mxu0 %v92
    %188 = vmatpush.msra.mxu0 %v90
    %189 = vmatpush.msra.mxu0 %v88
    %190 = vmatpush.msra.mxu0 %v86
    %191 = vmatpush.msra.mxu0 %v84
    %192 = vmatpush.msra.mxu0 %v82
    %193 = vmatpush.msra.mxu0 %v80
    %194 = vmatpush.msra.mxu0 %v78
    %195 = vmatpush.msra.mxu0 %v76
    %196 = vmatpush.msra.mxu0 %v74
    %197 = vmatpush.msra.mxu0 %v72
    %198 = vmatpush.msra.mxu0 %v70
    %199 = vmatmul.f32.gmra.mxu0 %v162
    %v200 = vpop.f32.mrf.mxu0
    %v201 = vadd.f32 0.0, %v200
    %202 = vdwg.mxu0
    %203 = vmax.xlane.f32.xlu0 %v201
    %v204 = vpop.xlane.xlu0 %203
    %v205 = vsub.f32 %v201, %v204
    %v206 = vmul.f32 %v205, 1.442695
    %v207 = vpow.pop %v206
    %208 = vadd.xlane.f32.xlu0 %v207
    %v209 = vpop.xlane.xlu0 %208
    %v210 = vlog2.pop %v209
    %v211 = vmul.f32 %v210, 0.6931472
    %212 = vst [vmem:[#allocation9] sm:$0xff] %v181
    %v213 = vsub.f32 %v205, %v211
    %s214 = scalar_lea.vmem [#allocation8], 8
    %215 = vst [vmem:[%s214] sm:$0xff] %v213
    %s216 = scalar_lea.vmem [#allocation2], 16
    %v217 = vld [vmem:[%s216] sm:$0xff]
    %v218 = vsel %vm102, %v217, 0.0
    %v219 = vld [vmem:[#allocation9] sm:$0xff]
    %v220 = vadd.f32 %v218, %v219
    %221 = vmatpush.msra.mxu0 %v99
    %222 = vmatpush.msra.mxu0 %v97
    %223 = vmatpush.msra.mxu0 %v95
    %224 = vmatpush.msra.mxu0 %v93
    %225 = vmatpush.msra.mxu0 %v91
    %226 = vmatpush.msra.mxu0 %v89
    %227 = vmatpush.msra.mxu0 %v87
    %228 = vmatpush.msra.mxu0 %v85
    %229 = vmatpush.msra.mxu0 %v83
    %230 = vmatpush.msra.mxu0 %v81
    %231 = vmatpush.msra.mxu0 %v79
    %232 = vmatpush.msra.mxu0 %v77
    %233 = vmatpush.msra.mxu0 %v75
    %234 = vmatpush.msra.mxu0 %v73
    %235 = vmatpush.msra.mxu0 %v71
    %236 = vmatpush.msra.mxu0 %v69
    %237 = vmatmul.f32.gmra.mxu0 %v220
    %v238 = vpop.f32.mrf.mxu0
    %v239 = vadd.f32 0.0, %v238
    %240 = vdwg.mxu0
    %241 = vmatpush.msra.mxu0 %v100
    %242 = vmatpush.msra.mxu0 %v98
    %243 = vmatpush.msra.mxu0 %v96
    %244 = vmatpush.msra.mxu0 %v94
    %245 = vmatpush.msra.mxu0 %v92
    %246 = vmatpush.msra.mxu0 %v90
    %247 = vmatpush.msra.mxu0 %v88
    %248 = vmatpush.msra.mxu0 %v86
    %249 = vmatpush.msra.mxu0 %v84
    %250 = vmatpush.msra.mxu0 %v82
    %251 = vmatpush.msra.mxu0 %v80
    %252 = vmatpush.msra.mxu0 %v78
    %253 = vmatpush.msra.mxu0 %v76
    %254 = vmatpush.msra.mxu0 %v74
    %255 = vmatpush.msra.mxu0 %v72
    %256 = vmatpush.msra.mxu0 %v70
    %257 = vmatmul.f32.gmra.mxu0 %v220
    %v258 = vpop.f32.mrf.mxu0
    %v259 = vadd.f32 0.0, %v258
    %260 = vdwg.mxu0
    %261 = vmax.xlane.f32.xlu0 %v259
    %v262 = vpop.xlane.xlu0 %261
    %v263 = vsub.f32 %v259, %v262
    %v264 = vmul.f32 %v263, 1.442695
    %v265 = vpow.pop %v264
    %266 = vadd.xlane.f32.xlu0 %v265
    %v267 = vpop.xlane.xlu0 %266
    %v268 = vlog2.pop %v267
    %v269 = vmul.f32 %v268, 0.6931472
    %270 = vst [vmem:[#allocation9] sm:$0xff] %v239
    %v271 = vsub.f32 %v263, %v269
    %s272 = scalar_lea.vmem [#allocation8], 16
    %273 = vst [vmem:[%s272] sm:$0xff] %v271
    %s274 = scalar_lea.vmem [#allocation2], 24
    %v275 = vld [vmem:[%s274] sm:$0xff]
    %v276 = vsel %vm102, %v275, 0.0
    %v277 = vld [vmem:[#allocation9] sm:$0xff]
    %v278 = vadd.f32 %v276, %v277
    %279 = vmatpush.msra.mxu0 %v99
    %280 = vmatpush.msra.mxu0 %v97
    %281 = vmatpush.msra.mxu0 %v95
    %282 = vmatpush.msra.mxu0 %v93
    %283 = vmatpush.msra.mxu0 %v91
    %284 = vmatpush.msra.mxu0 %v89
    %285 = vmatpush.msra.mxu0 %v87
    %286 = vmatpush.msra.mxu0 %v85
    %287 = vmatpush.msra.mxu0 %v83
    %288 = vmatpush.msra.mxu0 %v81
    %289 = vmatpush.msra.mxu0 %v79
    %290 = vmatpush.msra.mxu0 %v77
    %291 = vmatpush.msra.mxu0 %v75
    %292 = vmatpush.msra.mxu0 %v73
    %293 = vmatpush.msra.mxu0 %v71
    %294 = vmatpush.msra.mxu0 %v69
    %295 = vmatmul.f32.gmra.mxu0 %v278
    %v296 = vpop.f32.mrf.mxu0
    %v297 = vadd.f32 0.0, %v296
    %298 = vdwg.mxu0
    %299 = vmatpush.msra.mxu0 %v100
    %300 = vmatpush.msra.mxu0 %v98
    %301 = vmatpush.msra.mxu0 %v96
    %302 = vmatpush.msra.mxu0 %v94
    %303 = vmatpush.msra.mxu0 %v92
    %304 = vmatpush.msra.mxu0 %v90
    %305 = vmatpush.msra.mxu0 %v88
    %306 = vmatpush.msra.mxu0 %v86
    %307 = vmatpush.msra.mxu0 %v84
    %308 = vmatpush.msra.mxu0 %v82
    %309 = vmatpush.msra.mxu0 %v80
    %310 = vmatpush.msra.mxu0 %v78
    %311 = vmatpush.msra.mxu0 %v76
    %312 = vmatpush.msra.mxu0 %v74
    %313 = vmatpush.msra.mxu0 %v72
    %314 = vmatpush.msra.mxu0 %v70
    %315 = vmatmul.f32.gmra.mxu0 %v278
    %v316 = vpop.f32.mrf.mxu0
    %v317 = vadd.f32 0.0, %v316
    %318 = vdwg.mxu0
    %319 = vmax.xlane.f32.xlu0 %v317
    %v320 = vpop.xlane.xlu0 %319
    %v321 = vsub.f32 %v317, %v320
    %v322 = vmul.f32 %v321, 1.442695
    %v323 = vpow.pop %v322
    %324 = vadd.xlane.f32.xlu0 %v323
    %v325 = vpop.xlane.xlu0 %324
    %v326 = vlog2.pop %v325
    %v327 = vmul.f32 %v326, 0.6931472
    %328 = vst [vmem:[#allocation9] sm:$0xff] %v297
    %v329 = vsub.f32 %v321, %v327
    %s330 = scalar_lea.vmem [#allocation8], 24
    %331 = vst [vmem:[%s330] sm:$0xff] %v329
    %s332 = scalar_lea.vmem [#allocation2], 32
    %v333 = vld [vmem:[%s332] sm:$0xff]
    %v334 = vsel %vm102, %v333, 0.0
    %v335 = vld [vmem:[#allocation9] sm:$0xff]
    %v336 = vadd.f32 %v334, %v335
    %337 = vmatpush.msra.mxu0 %v99
    %338 = vmatpush.msra.mxu0 %v97
    %339 = vmatpush.msra.mxu0 %v95
    %340 = vmatpush.msra.mxu0 %v93
    %341 = vmatpush.msra.mxu0 %v91
    %342 = vmatpush.msra.mxu0 %v89
    %343 = vmatpush.msra.mxu0 %v87
    %344 = vmatpush.msra.mxu0 %v85
    %345 = vmatpush.msra.mxu0 %v83
    %346 = vmatpush.msra.mxu0 %v81
    %347 = vmatpush.msra.mxu0 %v79
    %348 = vmatpush.msra.mxu0 %v77
    %349 = vmatpush.msra.mxu0 %v75
    %350 = vmatpush.msra.mxu0 %v73
    %351 = vmatpush.msra.mxu0 %v71
    %352 = vmatpush.msra.mxu0 %v69
    %353 = vmatmul.f32.gmra.mxu0 %v336
    %v354 = vpop.f32.mrf.mxu0
    %v355 = vadd.f32 0.0, %v354
    %356 = vdwg.mxu0
    %357 = vmatpush.msra.mxu0 %v100
    %358 = vmatpush.msra.mxu0 %v98
    %359 = vmatpush.msra.mxu0 %v96
    %360 = vmatpush.msra.mxu0 %v94
    %361 = vmatpush.msra.mxu0 %v92
    %362 = vmatpush.msra.mxu0 %v90
    %363 = vmatpush.msra.mxu0 %v88
    %364 = vmatpush.msra.mxu0 %v86
    %365 = vmatpush.msra.mxu0 %v84
    %366 = vmatpush.msra.mxu0 %v82
    %367 = vmatpush.msra.mxu0 %v80
    %368 = vmatpush.msra.mxu0 %v78
    %369 = vmatpush.msra.mxu0 %v76
    %370 = vmatpush.msra.mxu0 %v74
    %371 = vmatpush.msra.mxu0 %v72
    %372 = vmatpush.msra.mxu0 %v70
    %373 = vmatmul.f32.gmra.mxu0 %v336
    %v374 = vpop.f32.mrf.mxu0
    %v375 = vadd.f32 0.0, %v374
    %376 = vdwg.mxu0
    %377 = vmax.xlane.f32.xlu0 %v375
    %v378 = vpop.xlane.xlu0 %377
    %v379 = vsub.f32 %v375, %v378
    %v380 = vmul.f32 %v379, 1.442695
    %v381 = vpow.pop %v380
    %382 = vadd.xlane.f32.xlu0 %v381
    %v383 = vpop.xlane.xlu0 %382
    %v384 = vlog2.pop %v383
    %v385 = vmul.f32 %v384, 0.6931472
    %386 = vst [vmem:[#allocation9] sm:$0xff] %v355
    %v387 = vsub.f32 %v379, %v385
    %s388 = scalar_lea.vmem [#allocation8], 32
    %389 = vst [vmem:[%s388] sm:$0xff] %v387
    %s390 = scalar_lea.vmem [#allocation2], 40
    %v391 = vld [vmem:[%s390] sm:$0xff]
    %v392 = vsel %vm102, %v391, 0.0
    %v393 = vld [vmem:[#allocation9] sm:$0xff]
    %v394 = vadd.f32 %v392, %v393
    %395 = vmatpush.msra.mxu0 %v99
    %396 = vmatpush.msra.mxu0 %v97
    %397 = vmatpush.msra.mxu0 %v95
    %398 = vmatpush.msra.mxu0 %v93
    %399 = vmatpush.msra.mxu0 %v91
    %400 = vmatpush.msra.mxu0 %v89
    %401 = vmatpush.msra.mxu0 %v87
    %402 = vmatpush.msra.mxu0 %v85
    %403 = vmatpush.msra.mxu0 %v83
    %404 = vmatpush.msra.mxu0 %v81
    %405 = vmatpush.msra.mxu0 %v79
    %406 = vmatpush.msra.mxu0 %v77
    %407 = vmatpush.msra.mxu0 %v75
    %408 = vmatpush.msra.mxu0 %v73
    %409 = vmatpush.msra.mxu0 %v71
    %410 = vmatpush.msra.mxu0 %v69
    %411 = vmatmul.f32.gmra.mxu0 %v394
    %v412 = vpop.f32.mrf.mxu0
    %v413 = vadd.f32 0.0, %v412
    %414 = vdwg.mxu0
    %415 = vmatpush.msra.mxu0 %v100
    %416 = vmatpush.msra.mxu0 %v98
    %417 = vmatpush.msra.mxu0 %v96
    %418 = vmatpush.msra.mxu0 %v94
    %419 = vmatpush.msra.mxu0 %v92
    %420 = vmatpush.msra.mxu0 %v90
    %421 = vmatpush.msra.mxu0 %v88
    %422 = vmatpush.msra.mxu0 %v86
    %423 = vmatpush.msra.mxu0 %v84
    %424 = vmatpush.msra.mxu0 %v82
    %425 = vmatpush.msra.mxu0 %v80
    %426 = vmatpush.msra.mxu0 %v78
    %427 = vmatpush.msra.mxu0 %v76
    %428 = vmatpush.msra.mxu0 %v74
    %429 = vmatpush.msra.mxu0 %v72
    %430 = vmatpush.msra.mxu0 %v70
    %431 = vmatmul.f32.gmra.mxu0 %v394
    %v432 = vpop.f32.mrf.mxu0
    %v433 = vadd.f32 0.0, %v432
    %434 = vdwg.mxu0
    %435 = vmax.xlane.f32.xlu0 %v433
    %v436 = vpop.xlane.xlu0 %435
    %v437 = vsub.f32 %v433, %v436
    %v438 = vmul.f32 %v437, 1.442695
    %v439 = vpow.pop %v438
    %440 = vadd.xlane.f32.xlu0 %v439
    %v441 = vpop.xlane.xlu0 %440
    %v442 = vlog2.pop %v441
    %v443 = vmul.f32 %v442, 0.6931472
    %444 = vst [vmem:[#allocation9] sm:$0xff] %v413
    %v445 = vsub.f32 %v437, %v443
    %s446 = scalar_lea.vmem [#allocation8], 40
    %447 = vst [vmem:[%s446] sm:$0xff] %v445
    %s448 = scalar_lea.vmem [#allocation2], 48
    %v449 = vld [vmem:[%s448] sm:$0xff]
    %v450 = vsel %vm102, %v449, 0.0
    %v451 = vld [vmem:[#allocation9] sm:$0xff]
    %v452 = vadd.f32 %v450, %v451
    %453 = vmatpush.msra.mxu0 %v99
    %454 = vmatpush.msra.mxu0 %v97
    %455 = vmatpush.msra.mxu0 %v95
    %456 = vmatpush.msra.mxu0 %v93
    %457 = vmatpush.msra.mxu0 %v91
    %458 = vmatpush.msra.mxu0 %v89
    %459 = vmatpush.msra.mxu0 %v87
    %460 = vmatpush.msra.mxu0 %v85
    %461 = vmatpush.msra.mxu0 %v83
    %462 = vmatpush.msra.mxu0 %v81
    %463 = vmatpush.msra.mxu0 %v79
    %464 = vmatpush.msra.mxu0 %v77
    %465 = vmatpush.msra.mxu0 %v75
    %466 = vmatpush.msra.mxu0 %v73
    %467 = vmatpush.msra.mxu0 %v71
    %468 = vmatpush.msra.mxu0 %v69
    %469 = vmatmul.f32.gmra.mxu0 %v452
    %v470 = vpop.f32.mrf.mxu0
    %v471 = vadd.f32 0.0, %v470
    %472 = vdwg.mxu0
    %473 = vmatpush.msra.mxu0 %v100
    %474 = vmatpush.msra.mxu0 %v98
    %475 = vmatpush.msra.mxu0 %v96
    %476 = vmatpush.msra.mxu0 %v94
    %477 = vmatpush.msra.mxu0 %v92
    %478 = vmatpush.msra.mxu0 %v90
    %479 = vmatpush.msra.mxu0 %v88
    %480 = vmatpush.msra.mxu0 %v86
    %481 = vmatpush.msra.mxu0 %v84
    %482 = vmatpush.msra.mxu0 %v82
    %483 = vmatpush.msra.mxu0 %v80
    %484 = vmatpush.msra.mxu0 %v78
    %485 = vmatpush.msra.mxu0 %v76
    %486 = vmatpush.msra.mxu0 %v74
    %487 = vmatpush.msra.mxu0 %v72
    %488 = vmatpush.msra.mxu0 %v70
    %489 = vmatmul.f32.gmra.mxu0 %v452
    %v490 = vpop.f32.mrf.mxu0
    %v491 = vadd.f32 0.0, %v490
    %492 = vdwg.mxu0
    %493 = vmax.xlane.f32.xlu0 %v491
    %v494 = vpop.xlane.xlu0 %493
    %v495 = vsub.f32 %v491, %v494
    %v496 = vmul.f32 %v495, 1.442695
    %v497 = vpow.pop %v496
    %498 = vadd.xlane.f32.xlu0 %v497
    %v499 = vpop.xlane.xlu0 %498
    %v500 = vlog2.pop %v499
    %v501 = vmul.f32 %v500, 0.6931472
    %502 = vst [vmem:[#allocation9] sm:$0xff] %v471
    %v503 = vsub.f32 %v495, %v501
    %s504 = scalar_lea.vmem [#allocation8], 48
    %505 = vst [vmem:[%s504] sm:$0xff] %v503
    %s506 = scalar_lea.vmem [#allocation2], 56
    %v507 = vld [vmem:[%s506] sm:$0xff]
    %v508 = vsel %vm102, %v507, 0.0
    %v509 = vld [vmem:[#allocation9] sm:$0xff]
    %v510 = vadd.f32 %v508, %v509
    %511 = vmatpush.msra.mxu0 %v99
    %512 = vmatpush.msra.mxu0 %v97
    %513 = vmatpush.msra.mxu0 %v95
    %514 = vmatpush.msra.mxu0 %v93
    %515 = vmatpush.msra.mxu0 %v91
    %516 = vmatpush.msra.mxu0 %v89
    %517 = vmatpush.msra.mxu0 %v87
    %518 = vmatpush.msra.mxu0 %v85
    %519 = vmatpush.msra.mxu0 %v83
    %520 = vmatpush.msra.mxu0 %v81
    %521 = vmatpush.msra.mxu0 %v79
    %522 = vmatpush.msra.mxu0 %v77
    %523 = vmatpush.msra.mxu0 %v75
    %524 = vmatpush.msra.mxu0 %v73
    %525 = vmatpush.msra.mxu0 %v71
    %526 = vmatpush.msra.mxu0 %v69
    %527 = vmatmul.f32.gmra.mxu0 %v510
    %v528 = vpop.f32.mrf.mxu0
    %v529 = vadd.f32 0.0, %v528
    %530 = vdwg.mxu0
    %531 = vmatpush.msra.mxu0 %v100
    %532 = vmatpush.msra.mxu0 %v98
    %533 = vmatpush.msra.mxu0 %v96
    %534 = vmatpush.msra.mxu0 %v94
    %535 = vmatpush.msra.mxu0 %v92
    %536 = vmatpush.msra.mxu0 %v90
    %537 = vmatpush.msra.mxu0 %v88
    %538 = vmatpush.msra.mxu0 %v86
    %539 = vmatpush.msra.mxu0 %v84
    %540 = vmatpush.msra.mxu0 %v82
    %541 = vmatpush.msra.mxu0 %v80
    %542 = vmatpush.msra.mxu0 %v78
    %543 = vmatpush.msra.mxu0 %v76
    %544 = vmatpush.msra.mxu0 %v74
    %545 = vmatpush.msra.mxu0 %v72
    %546 = vmatpush.msra.mxu0 %v70
    %547 = vmatmul.f32.gmra.mxu0 %v510
    %v548 = vpop.f32.mrf.mxu0
    %v549 = vadd.f32 0.0, %v548
    %550 = vdwg.mxu0
    %551 = vmax.xlane.f32.xlu0 %v549
    %v552 = vpop.xlane.xlu0 %551
    %v553 = vsub.f32 %v549, %v552
    %v554 = vmul.f32 %v553, 1.442695
    %v555 = vpow.pop %v554
    %556 = vadd.xlane.f32.xlu0 %v555
    %v557 = vpop.xlane.xlu0 %556
    %v558 = vlog2.pop %v557
    %v559 = vmul.f32 %v558, 0.6931472
    %560 = vst [vmem:[#allocation9] sm:$0xff] %v529
    %v561 = vsub.f32 %v553, %v559
    %s562 = scalar_lea.vmem [#allocation8], 56
    %563 = vst [vmem:[%s562] sm:$0xff] %v561
    // Predicated region
    $region30: #{tpu_custom_call.1} parent=1 // pred_check
      _
    $region31: #{tpu_custom_call.1} parent=1 // pred_check_branch
      %565 = sbr.rel (0) target = $region33
    $region32: #{tpu_custom_call.1} parent=1 // pred_region
      %567 = vsyncadd [#allocation4], 0
      %s568 = sshll.u32 [#allocation8], 4
      %s569 = int_to_ptr.vmem [resolvable:$true] %s568
      %s570 = sshll.u32 %s3, 4
      %s571 = int_to_ptr.hbm [resolvable:$true] %s570
      %576 = dma.vmem_to_hbm [thread:$0]  %s569, 1024, %s571, [#allocation4], 128, 128, 8
    $region33: #{tpu_custom_call.1} parent=1 // pred_fallthru
      _
    // Predicated region
    $region34: #{tpu_custom_call.1} parent=1 // pred_check
      _
    $region35: #{tpu_custom_call.1} parent=1 // pred_check_branch
      %578 = sbr.rel (0) target = $region37
    $region36: #{tpu_custom_call.1} parent=1 // pred_region
      %580 = vsyncadd [#allocation10], 0
      %s582 = sshll.u32 [#allocation9], 4
      %s583 = int_to_ptr.vmem [resolvable:$true] %s582
      %s584 = sshll.u32 %s4, 4
      %s585 = int_to_ptr.hbm [resolvable:$true] %s584
      %587 = dma.vmem_to_hbm [thread:$0]  %s583, 128, %s585, [#allocation10]
    $region37: #{tpu_custom_call.1} parent=1 // pred_fallthru
      _
    // Predicated region
    $region38: #{tpu_custom_call.1} parent=1 // pred_check
      _
    $region39: #{tpu_custom_call.1} parent=1 // pred_check_branch
      %589 = sbr.rel (0) target = $region41
    $region40: #{tpu_custom_call.1} parent=1 // pred_region
      %591 = dma.done [#allocation4], 1024
    $region41: #{tpu_custom_call.1} parent=1 // pred_fallthru
      _
    // Predicated region
    $region42: #{tpu_custom_call.1} parent=1 // pred_check
      _
    $region43: #{tpu_custom_call.1} parent=1 // pred_check_branch
      %593 = sbr.rel (0) target = $region45
    $region44: #{tpu_custom_call.1} parent=1 // pred_region
      %595 = dma.done [#allocation10], 128
    $region45: #{tpu_custom_call.1} parent=1 // pred_fallthru
      _
    %596 = vsyncpa [#allocation3], 1
    %597 = vsyncpa [#allocation6], 1
    %598 = vsyncpa [#allocation4], 1
    %599 = vsyncpa [#allocation10], 1

</llo_original>
